<compile_context>
chip_gen: v7x
topology: tpu7x:2x2x1
jax: 0.10.0
libtpu: 0.0.40
codegen_flags: <defaults>
</compile_context>

<pallas_src>
import functools

import jax
import jax.numpy as jnp
from jax import lax
from jax.experimental import pallas as pl
from jax.experimental.pallas import tpu as pltpu


def _proj_kernel(x_ref, w_ref, b_ref, o_ref, *, hw, thw):
    """One (batch image, HW-tile) grid step.

    x_ref: [C, THW]  channels-first pixel tile (free reshape of NCHW)
    w_ref: [D, C]    1x1 conv weight (kernel dims squeezed)
    b_ref: [1, D]    bias
    o_ref: [THW, D]  pixel-major output tile (matches 'B (H W) D')
    """
    x = x_ref[...]

    # Ragged-tail guard: traced only when HW is not a multiple of the tile,
    # and executed only on the last HW tile (scf.if) so non-tail steps pay
    # nothing. (Out-of-range output rows are clipped by Pallas anyway; this
    # just keeps garbage out of the matmul.)
    if hw % thw != 0:
        def _mask(xv):
            lane = lax.broadcasted_iota(jnp.int32, xv.shape, 1)
            return jnp.where(pl.program_id(1) * thw + lane < hw, xv, 0.0)

        x = lax.cond(
            pl.program_id(1) == pl.num_programs(1) - 1, _mask, lambda xv: xv, x
        )

    # Channel contraction in natural NCHW orientation:
    #   p[d, t] = sum_c W[d, c] * x[c, t]
    # K = C = 4, so MXU utilization is irrelevant; HIGHEST precision for
    # bit-parity with f32 Conv2d at negligible cost.
    p = jnp.dot(
        w_ref[...],
        x,
        precision=lax.Precision.HIGHEST,
        preferred_element_type=jnp.float32,
    )  # [D, THW]

    # Fused 'D HW -> HW D' layout change: a real 2-D transpose on the XLU
    # (otherwise-idle unit), NOT an identity matmul on the MXU.
    out = jnp.transpose(p)  # [THW, D]

    o_ref[...] = (out + b_ref[...]).astype(o_ref.dtype)


def conv1x1_to_tokens(x_nchw, weight, bias, *, max_hw_tile=512):
    """x_nchw: [B, C, H, W], weight: [D, C], bias: [D] -> [B, H*W, D]."""
    B, C, H, W = x_nchw.shape
    D = weight.shape[0]
    HW = H * W

    x3 = x_nchw.reshape(B, C, HW)  # free row-major reshape (no HBM pass)
    b2 = bias.reshape(1, D)

    # Whole image per step when it fits, otherwise large 512-pixel tiles
    # (>=512-row tiles are ~85% of HBM roofline per measured tile sweeps).
    thw = HW if HW <= max_hw_tile else max_hw_tile
    grid = (B, pl.cdiv(HW, thw))  # ragged tail allowed, no divisibility assert

    kernel = functools.partial(_proj_kernel, hw=HW, thw=thw)
    return pl.pallas_call(
        kernel,
        out_shape=jax.ShapeDtypeStruct((B, HW, D), x_nchw.dtype),
        grid_spec=pltpu.PrefetchScalarGridSpec(
            num_scalar_prefetch=0,
            grid=grid,
            in_specs=[
                pl.BlockSpec((None, C, thw), lambda b, j: (b, 0, j)),  # [C, THW]
                pl.BlockSpec((D, C), lambda b, j: (0, 0)),             # resident weight
                pl.BlockSpec((1, D), lambda b, j: (0, 0)),             # resident bias
            ],
            out_specs=pl.BlockSpec((None, thw, D), lambda b, j: (b, j, 0)),
        ),
        compiler_params=pltpu.CompilerParams(
            # Independent output tiles on both axes. On v7x, switching the batch
            # axis to pltpu.CORE_PARALLEL (or a pl.core_map over the 2-TC mesh)
            # would shard the two images across TensorCores; kept as "parallel"
            # here for portable lowering on v5e/v6e/v7x.
            dimension_semantics=("parallel", "parallel"),
            # True per-step footprint is ~100 KiB (2x 8 KiB x-tile, 2x 32 KiB
            # out-tile, ~1 KiB weight/bias); leave VMEM headroom for neighbors.
            vmem_limit_bytes=4 * 1024 * 1024,
        ),
    )(x3, weight, b2)


def simple_module_forward(x, weight, bias, *, max_hw_tile=512):
    """x: [B, 1, C, H, W], weight: [D, C] (1x1 conv), bias: [D] -> [B, H*W, D]."""
    x = jnp.squeeze(x, axis=1)  # [B, C, H, W]
    return conv1x1_to_tokens(x, weight, bias, max_hw_tile=max_hw_tile)


if __name__ == "__main__":
    B, C, H, W = 2, 4, 16, 16  # input_dim = 4
    D = 32                     # embed_dim = 32

    key = jax.random.PRNGKey(0)
    kx, kw, kb = jax.random.split(key, 3)
    x = jax.random.normal(kx, (B, 1, C, H, W), dtype=jnp.float32)
    # Conv2d(C, D, kernel_size=1) weight is [D, C, 1, 1]; stored here as [D, C].
    weight = jax.random.normal(kw, (D, C), dtype=jnp.float32) * 0.1
    bias = jax.random.normal(kb, (D,), dtype=jnp.float32) * 0.1

    fwd = jax.jit(simple_module_forward)
    out = fwd(x, weight, bias)
    jax.block_until_ready(out)

    # Reference (1x1 conv == channel einsum) in plain JAX, matching precision.
    xs = jnp.squeeze(x, axis=1)
    ref = (
        jnp.einsum("bchw,dc->bhwd", xs, weight, precision=lax.Precision.HIGHEST)
        + bias
    ).reshape(B, H * W, D)
    assert out.shape == (B, H * W, D)
    assert jnp.allclose(out, ref, atol=1e-5, rtol=1e-5), float(
        jnp.max(jnp.abs(out - ref))
    )

    print("KERNEL_OK")
</pallas_src>

<mosaic_0001>
module attributes {stable_mosaic.version = 11 : i64} {
  func.func @_proj_kernel(%arg0: i32, %arg1: i32, %arg2: memref<1x4x256xf32, #tpu.memory_space<vmem>>, %arg3: memref<32x4xf32, #tpu.memory_space<vmem>>, %arg4: memref<1x32xf32, #tpu.memory_space<vmem>>, %arg5: memref<1x256x32xf32, #tpu.memory_space<vmem>>) attributes {dimension_semantics = [#tpu.dimension_semantics<parallel>, #tpu.dimension_semantics<parallel>], iteration_bounds = array<i64: 2, 1>, scalar_prefetch = 0 : i64, scratch_operands = 0 : i64, tpu.core_type = #tpu.core_type<tc>, window_params = [{transform_indices = @transform_0, window_bounds = array<i64: 1, 4, 256>}, {pipeline_mode = #tpu.pipeline_mode<synchronous>, transform_indices = @transform_1, window_bounds = array<i64: 32, 4>}, {pipeline_mode = #tpu.pipeline_mode<synchronous>, transform_indices = @transform_2, window_bounds = array<i64: 1, 32>}, {transform_indices = @transform_3, window_bounds = array<i64: 1, 256, 32>}]} {
    %c0 = arith.constant 0 : index
    %c0_0 = arith.constant 0 : index
    %c0_1 = arith.constant 0 : index
    %0 = vector.load %arg2[%c0, %c0_0, %c0_1] : memref<1x4x256xf32, #tpu.memory_space<vmem>>, vector<1x4x256xf32>
    %1 = vector.shape_cast %0 : vector<1x4x256xf32> to vector<4x256xf32>
    %c0_2 = arith.constant 0 : index
    %c0_3 = arith.constant 0 : index
    %2 = vector.load %arg3[%c0_2, %c0_3] : memref<32x4xf32, #tpu.memory_space<vmem>>, vector<32x4xf32>
    %cst = arith.constant dense<0.000000e+00> : vector<32x256xf32>
    %3 = tpu.matmul %2, %1, %cst {dimension_numbers = #tpu.dot_dimension_numbers<[1], [0], [0], [1], [0, 0, 1, 1], [], []>, precision = #tpu.contract_precision<fp32>} : vector<32x4xf32>, vector<4x256xf32>, vector<32x256xf32> -> vector<32x256xf32>
    %4 = tpu.transpose %3, [1, 0] : vector<32x256xf32> -> vector<256x32xf32>
    %c0_4 = arith.constant 0 : index
    %c0_5 = arith.constant 0 : index
    %5 = vector.load %arg4[%c0_4, %c0_5] : memref<1x32xf32, #tpu.memory_space<vmem>>, vector<1x32xf32>
    %6 = vector.broadcast %5 : vector<1x32xf32> to vector<256x32xf32>
    %7 = arith.addf %4, %6 : vector<256x32xf32>
    %c0_6 = arith.constant 0 : index
    %c0_7 = arith.constant 0 : index
    %c0_8 = arith.constant 0 : index
    %8 = vector.load %arg5[%c0_6, %c0_7, %c0_8] : memref<1x256x32xf32, #tpu.memory_space<vmem>>, vector<1x256x32xf32>
    %9 = vector.shape_cast %8 : vector<1x256x32xf32> to vector<256x32xf32>
    %10 = vector.shape_cast %7 : vector<256x32xf32> to vector<1x256x32xf32>
    tpu.vector_store %arg5[%c0_6, %c0_7, %c0_8], %10 {strides = array<i32>} : memref<1x256x32xf32, #tpu.memory_space<vmem>>, vector<1x256x32xf32>,
    return
  }
  func.func @transform_0(%arg0: i32, %arg1: i32) -> (i32, i32, i32) {
    %c0_i32 = arith.constant 0 : i32
    %c0_i32_0 = arith.constant 0 : i32
    return %arg0, %c0_i32, %arg1 : i32, i32, i32
  }
  func.func @transform_1(%arg0: i32, %arg1: i32) -> (i32, i32) {
    %c0_i32 = arith.constant 0 : i32
    %c0_i32_0 = arith.constant 0 : i32
    %c0_i32_1 = arith.constant 0 : i32
    return %c0_i32, %c0_i32_0 : i32, i32
  }
  func.func @transform_2(%arg0: i32, %arg1: i32) -> (i32, i32) {
    %c0_i32 = arith.constant 0 : i32
    %c0_i32_0 = arith.constant 0 : i32
    %c0_i32_1 = arith.constant 0 : i32
    return %c0_i32, %c0_i32_0 : i32, i32
  }
  func.func @transform_3(%arg0: i32, %arg1: i32) -> (i32, i32, i32) {
    %c0_i32 = arith.constant 0 : i32
    %c0_i32_0 = arith.constant 0 : i32
    return %arg0, %arg1, %c0_i32 : i32, i32, i32
  }
}

</mosaic_0001>

<llo_original>
// kernel: squeeze.1
$region0: #{squeeze.1}
  %s0 = inlined_call_operand.hbm [shape: f32[2,1,4,16,16], index: 0, kind: input, shape index: {}]
  %s1 = inlined_call_operand.vmem [shape: f32[2,4,256], index: 1, kind: output, shape index: {}]
  $region1: #{squeeze.1} parent=0
    #allocation0 [shape = 'u8[65536]{0}', space=vmem, size = 0x10000, scoped, tag = 'operand span for operand 0']
    #allocation1 [shape = 's32[1]{0}', space=sflag, size = 0x4, scoped, tag = 'scoped memory for squeeze.1']
    #allocation2 [shape = 'u8[16384]{0}', space=vmem, size = 0x4000, scoped, tag = 'scoped mem for output reshape']
    %2 = vsyncpa [#allocation1], 0
    %s4 = ssub.s32 2048, 2048
    %5 = vsyncadd [#allocation1], %s4
    %s7 = sshll.u32 [#allocation0], 4
    %s8 = int_to_ptr.vmem [resolvable:$true] %s7
    %10 = dma.hbm_to_vmem [thread:$0]  %s0, 2048, %s8, [#allocation1]
    %11 = dma.done [#allocation1], 2048
    %v12 = vld [vmem:[#allocation0] ss:$8 sm:$0xf]
    %v13 = vld [vmem:[#allocation0] ss:$8 sm:$0xf0]
    %vm14 = vcmask 1047556
    %v15 = vsel %vm14, %v13, %v12
    %vm16 = vcmask 130048
    %17 = vst.msk [vmem:[#allocation2] ss:$8 sm:$0x3] %vm16, %v15
    %s18 = scalar_lea.vmem [#allocation2], 4294967281
    %19 = vst.msk [vmem:[%s18] ss:$8 sm:$0xc] %vm16, %v15
    %s20 = scalar_lea.vmem [#allocation2], 4294967266
    %21 = vst.msk [vmem:[%s20] ss:$8 sm:$0x30] %vm16, %v15
    %s22 = scalar_lea.vmem [#allocation2], 4294967251
    %23 = vst.msk [vmem:[%s22] ss:$8 sm:$0xc0] %vm16, %v15
    %s24 = scalar_lea.vmem [#allocation0], 64
    %v25 = vld [vmem:[%s24] ss:$8 sm:$0xf]
    %s26 = scalar_lea.vmem [#allocation0], 64
    %v27 = vld [vmem:[%s26] ss:$8 sm:$0xf0]
    %vm28 = vcmask 1047556
    %v29 = vsel %vm28, %v27, %v25
    %vm30 = vcmask 130048
    %s31 = scalar_lea.vmem [#allocation2], 16
    %32 = vst.msk [vmem:[%s31] ss:$8 sm:$0x3] %vm30, %v29
    %s33 = scalar_lea.vmem [#allocation2], 1
    %34 = vst.msk [vmem:[%s33] ss:$8 sm:$0xc] %vm30, %v29
    %s35 = scalar_lea.vmem [#allocation2], 4294967282
    %36 = vst.msk [vmem:[%s35] ss:$8 sm:$0x30] %vm30, %v29
    %s37 = scalar_lea.vmem [#allocation2], 4294967267
    %38 = vst.msk [vmem:[%s37] ss:$8 sm:$0xc0] %vm30, %v29
    %s39 = scalar_lea.vmem [#allocation0], 7
    %s40 = smov 3
    %v41 = vld [vmem:[%s39] ss:$16 sm:%s40]
    %s42 = scalar_lea.vmem [#allocation0], 7
    %s43 = smov 12
    %v44 = vld [vmem:[%s42] ss:$16 sm:%s43]
    %vm45 = vcmask 1043458
    %v46 = vsel %vm45, %v44, %v41
    %s47 = scalar_lea.vmem [#allocation0], 4294967247
    %s48 = smov 48
    %v49 = vld [vmem:[%s47] ss:$16 sm:%s48]
    %vm50 = vcmask 1045508
    %v51 = vsel %vm50, %v49, %v46
    %s52 = scalar_lea.vmem [#allocation0], 4294967247
    %s53 = smov 192
    %v54 = vld [vmem:[%s52] ss:$16 sm:%s53]
    %vm55 = vcmask 1047558
    %v56 = vsel %vm55, %v54, %v51
    %57 = vrot.lane.b32.xlu0 %v56, 112
    %v58 = vpop.permute.xlu0 %57
    %vm59 = vcmask 1048448
    %60 = vst.msk [vmem:[#allocation2] sm:$0xf] %vm59, %v58
    %s61 = scalar_lea.vmem [#allocation2], 4
    %62 = vst.msk [vmem:[%s61] sm:$0xf0] %vm59, %v58
    %s63 = scalar_lea.vmem [#allocation0], 71
    %s64 = smov 3
    %v65 = vld [vmem:[%s63] ss:$16 sm:%s64]
    %s66 = scalar_lea.vmem [#allocation0], 71
    %s67 = smov 12
    %v68 = vld [vmem:[%s66] ss:$16 sm:%s67]
    %vm69 = vcmask 1043458
    %v70 = vsel %vm69, %v68, %v65
    %s71 = scalar_lea.vmem [#allocation0], 15
    %s72 = smov 48
    %v73 = vld [vmem:[%s71] ss:$16 sm:%s72]
    %vm74 = vcmask 1045508
    %v75 = vsel %vm74, %v73, %v70
    %s76 = scalar_lea.vmem [#allocation0], 15
    %s77 = smov 192
    %v78 = vld [vmem:[%s76] ss:$16 sm:%s77]
    %vm79 = vcmask 1047558
    %v80 = vsel %vm79, %v78, %v75
    %81 = vrot.lane.b32.xlu0 %v80, 112
    %v82 = vpop.permute.xlu0 %81
    %vm83 = vcmask 1048448
    %s84 = scalar_lea.vmem [#allocation2], 16
    %85 = vst.msk [vmem:[%s84] sm:$0xf] %vm83, %v82
    %s86 = scalar_lea.vmem [#allocation2], 20
    %87 = vst.msk [vmem:[%s86] sm:$0xf0] %vm83, %v82
    %s88 = scalar_lea.vmem [#allocation0], 6
    %s89 = smov 3
    %v90 = vld [vmem:[%s88] ss:$16 sm:%s89]
    %s91 = scalar_lea.vmem [#allocation0], 6
    %s92 = smov 12
    %v93 = vld [vmem:[%s91] ss:$16 sm:%s92]
    %vm94 = vcmask 1043458
    %v95 = vsel %vm94, %v93, %v90
    %s96 = scalar_lea.vmem [#allocation0], 4294967246
    %s97 = smov 48
    %v98 = vld [vmem:[%s96] ss:$16 sm:%s97]
    %vm99 = vcmask 1045508
    %v100 = vsel %vm99, %v98, %v95
    %s101 = scalar_lea.vmem [#allocation0], 4294967246
    %s102 = smov 192
    %v103 = vld [vmem:[%s101] ss:$16 sm:%s102]
    %vm104 = vcmask 1047558
    %v105 = vsel %vm104, %v103, %v100
    %106 = vrot.lane.b32.xlu0 %v105, 96
    %v107 = vpop.permute.xlu0 %106
    %vm108 = vcmask 917248
    %109 = vst.msk [vmem:[#allocation2] sm:$0xf] %vm108, %v107
    %s110 = scalar_lea.vmem [#allocation2], 4
    %111 = vst.msk [vmem:[%s110] sm:$0xf0] %vm108, %v107
    %s112 = scalar_lea.vmem [#allocation0], 70
    %s113 = smov 3
    %v114 = vld [vmem:[%s112] ss:$16 sm:%s113]
    %s115 = scalar_lea.vmem [#allocation0], 70
    %s116 = smov 12
    %v117 = vld [vmem:[%s115] ss:$16 sm:%s116]
    %vm118 = vcmask 1043458
    %v119 = vsel %vm118, %v117, %v114
    %s120 = scalar_lea.vmem [#allocation0], 14
    %s121 = smov 48
    %v122 = vld [vmem:[%s120] ss:$16 sm:%s121]
    %vm123 = vcmask 1045508
    %v124 = vsel %vm123, %v122, %v119
    %s125 = scalar_lea.vmem [#allocation0], 14
    %s126 = smov 192
    %v127 = vld [vmem:[%s125] ss:$16 sm:%s126]
    %vm128 = vcmask 1047558
    %v129 = vsel %vm128, %v127, %v124
    %130 = vrot.lane.b32.xlu0 %v129, 96
    %v131 = vpop.permute.xlu0 %130
    %vm132 = vcmask 917248
    %s133 = scalar_lea.vmem [#allocation2], 16
    %134 = vst.msk [vmem:[%s133] sm:$0xf] %vm132, %v131
    %s135 = scalar_lea.vmem [#allocation2], 20
    %136 = vst.msk [vmem:[%s135] sm:$0xf0] %vm132, %v131
    %s137 = scalar_lea.vmem [#allocation0], 5
    %s138 = smov 3
    %v139 = vld [vmem:[%s137] ss:$16 sm:%s138]
    %s140 = scalar_lea.vmem [#allocation0], 5
    %s141 = smov 12
    %v142 = vld [vmem:[%s140] ss:$16 sm:%s141]
    %vm143 = vcmask 1043458
    %v144 = vsel %vm143, %v142, %v139
    %s145 = scalar_lea.vmem [#allocation0], 4294967245
    %s146 = smov 48
    %v147 = vld [vmem:[%s145] ss:$16 sm:%s146]
    %vm148 = vcmask 1045508
    %v149 = vsel %vm148, %v147, %v144
    %s150 = scalar_lea.vmem [#allocation0], 4294967245
    %s151 = smov 192
    %v152 = vld [vmem:[%s150] ss:$16 sm:%s151]
    %vm153 = vcmask 1047558
    %v154 = vsel %vm153, %v152, %v149
    %155 = vrot.lane.b32.xlu0 %v154, 80
    %v156 = vpop.permute.xlu0 %155
    %vm157 = vcmask 786048
    %158 = vst.msk [vmem:[#allocation2] sm:$0xf] %vm157, %v156
    %s159 = scalar_lea.vmem [#allocation2], 4
    %160 = vst.msk [vmem:[%s159] sm:$0xf0] %vm157, %v156
    %s161 = scalar_lea.vmem [#allocation0], 69
    %s162 = smov 3
    %v163 = vld [vmem:[%s161] ss:$16 sm:%s162]
    %s164 = scalar_lea.vmem [#allocation0], 69
    %s165 = smov 12
    %v166 = vld [vmem:[%s164] ss:$16 sm:%s165]
    %vm167 = vcmask 1043458
    %v168 = vsel %vm167, %v166, %v163
    %s169 = scalar_lea.vmem [#allocation0], 13
    %s170 = smov 48
    %v171 = vld [vmem:[%s169] ss:$16 sm:%s170]
    %vm172 = vcmask 1045508
    %v173 = vsel %vm172, %v171, %v168
    %s174 = scalar_lea.vmem [#allocation0], 13
    %s175 = smov 192
    %v176 = vld [vmem:[%s174] ss:$16 sm:%s175]
    %vm177 = vcmask 1047558
    %v178 = vsel %vm177, %v176, %v173
    %179 = vrot.lane.b32.xlu0 %v178, 80
    %v180 = vpop.permute.xlu0 %179
    %vm181 = vcmask 786048
    %s182 = scalar_lea.vmem [#allocation2], 16
    %183 = vst.msk [vmem:[%s182] sm:$0xf] %vm181, %v180
    %s184 = scalar_lea.vmem [#allocation2], 20
    %185 = vst.msk [vmem:[%s184] sm:$0xf0] %vm181, %v180
    %s186 = scalar_lea.vmem [#allocation0], 4
    %s187 = smov 3
    %v188 = vld [vmem:[%s186] ss:$16 sm:%s187]
    %s189 = scalar_lea.vmem [#allocation0], 4
    %s190 = smov 12
    %v191 = vld [vmem:[%s189] ss:$16 sm:%s190]
    %vm192 = vcmask 1043458
    %v193 = vsel %vm192, %v191, %v188
    %s194 = scalar_lea.vmem [#allocation0], 4294967244
    %s195 = smov 48
    %v196 = vld [vmem:[%s194] ss:$16 sm:%s195]
    %vm197 = vcmask 1045508
    %v198 = vsel %vm197, %v196, %v193
    %s199 = scalar_lea.vmem [#allocation0], 4294967244
    %s200 = smov 192
    %v201 = vld [vmem:[%s199] ss:$16 sm:%s200]
    %vm202 = vcmask 1047558
    %v203 = vsel %vm202, %v201, %v198
    %204 = vrot.lane.b32.xlu0 %v203, 64
    %v205 = vpop.permute.xlu0 %204
    %vm206 = vcmask 654848
    %207 = vst.msk [vmem:[#allocation2] sm:$0xf] %vm206, %v205
    %s208 = scalar_lea.vmem [#allocation2], 4
    %209 = vst.msk [vmem:[%s208] sm:$0xf0] %vm206, %v205
    %s210 = scalar_lea.vmem [#allocation0], 68
    %s211 = smov 3
    %v212 = vld [vmem:[%s210] ss:$16 sm:%s211]
    %s213 = scalar_lea.vmem [#allocation0], 68
    %s214 = smov 12
    %v215 = vld [vmem:[%s213] ss:$16 sm:%s214]
    %vm216 = vcmask 1043458
    %v217 = vsel %vm216, %v215, %v212
    %s218 = scalar_lea.vmem [#allocation0], 12
    %s219 = smov 48
    %v220 = vld [vmem:[%s218] ss:$16 sm:%s219]
    %vm221 = vcmask 1045508
    %v222 = vsel %vm221, %v220, %v217
    %s223 = scalar_lea.vmem [#allocation0], 12
    %s224 = smov 192
    %v225 = vld [vmem:[%s223] ss:$16 sm:%s224]
    %vm226 = vcmask 1047558
    %v227 = vsel %vm226, %v225, %v222
    %228 = vrot.lane.b32.xlu0 %v227, 64
    %v229 = vpop.permute.xlu0 %228
    %vm230 = vcmask 654848
    %s231 = scalar_lea.vmem [#allocation2], 16
    %232 = vst.msk [vmem:[%s231] sm:$0xf] %vm230, %v229
    %s233 = scalar_lea.vmem [#allocation2], 20
    %234 = vst.msk [vmem:[%s233] sm:$0xf0] %vm230, %v229
    %s235 = scalar_lea.vmem [#allocation0], 3
    %s236 = smov 3
    %v237 = vld [vmem:[%s235] ss:$16 sm:%s236]
    %s238 = scalar_lea.vmem [#allocation0], 3
    %s239 = smov 12
    %v240 = vld [vmem:[%s238] ss:$16 sm:%s239]
    %vm241 = vcmask 1043458
    %v242 = vsel %vm241, %v240, %v237
    %s243 = scalar_lea.vmem [#allocation0], 4294967243
    %s244 = smov 48
    %v245 = vld [vmem:[%s243] ss:$16 sm:%s244]
    %vm246 = vcmask 1045508
    %v247 = vsel %vm246, %v245, %v242
    %s248 = scalar_lea.vmem [#allocation0], 4294967243
    %s249 = smov 192
    %v250 = vld [vmem:[%s248] ss:$16 sm:%s249]
    %vm251 = vcmask 1047558
    %v252 = vsel %vm251, %v250, %v247
    %253 = vrot.lane.b32.xlu0 %v252, 48
    %v254 = vpop.permute.xlu0 %253
    %vm255 = vcmask 523648
    %256 = vst.msk [vmem:[#allocation2] sm:$0xf] %vm255, %v254
    %s257 = scalar_lea.vmem [#allocation2], 4
    %258 = vst.msk [vmem:[%s257] sm:$0xf0] %vm255, %v254
    %s259 = scalar_lea.vmem [#allocation0], 67
    %s260 = smov 3
    %v261 = vld [vmem:[%s259] ss:$16 sm:%s260]
    %s262 = scalar_lea.vmem [#allocation0], 67
    %s263 = smov 12
    %v264 = vld [vmem:[%s262] ss:$16 sm:%s263]
    %vm265 = vcmask 1043458
    %v266 = vsel %vm265, %v264, %v261
    %s267 = scalar_lea.vmem [#allocation0], 11
    %s268 = smov 48
    %v269 = vld [vmem:[%s267] ss:$16 sm:%s268]
    %vm270 = vcmask 1045508
    %v271 = vsel %vm270, %v269, %v266
    %s272 = scalar_lea.vmem [#allocation0], 11
    %s273 = smov 192
    %v274 = vld [vmem:[%s272] ss:$16 sm:%s273]
    %vm275 = vcmask 1047558
    %v276 = vsel %vm275, %v274, %v271
    %277 = vrot.lane.b32.xlu0 %v276, 48
    %v278 = vpop.permute.xlu0 %277
    %vm279 = vcmask 523648
    %s280 = scalar_lea.vmem [#allocation2], 16
    %281 = vst.msk [vmem:[%s280] sm:$0xf] %vm279, %v278
    %s282 = scalar_lea.vmem [#allocation2], 20
    %283 = vst.msk [vmem:[%s282] sm:$0xf0] %vm279, %v278
    %s284 = scalar_lea.vmem [#allocation0], 2
    %s285 = smov 3
    %v286 = vld [vmem:[%s284] ss:$16 sm:%s285]
    %s287 = scalar_lea.vmem [#allocation0], 2
    %s288 = smov 12
    %v289 = vld [vmem:[%s287] ss:$16 sm:%s288]
    %vm290 = vcmask 1043458
    %v291 = vsel %vm290, %v289, %v286
    %s292 = scalar_lea.vmem [#allocation0], 4294967242
    %s293 = smov 48
    %v294 = vld [vmem:[%s292] ss:$16 sm:%s293]
    %vm295 = vcmask 1045508
    %v296 = vsel %vm295, %v294, %v291
    %s297 = scalar_lea.vmem [#allocation0], 4294967242
    %s298 = smov 192
    %v299 = vld [vmem:[%s297] ss:$16 sm:%s298]
    %vm300 = vcmask 1047558
    %v301 = vsel %vm300, %v299, %v296
    %302 = vrot.lane.b32.xlu0 %v301, 32
    %v303 = vpop.permute.xlu0 %302
    %vm304 = vcmask 392448
    %305 = vst.msk [vmem:[#allocation2] sm:$0xf] %vm304, %v303
    %s306 = scalar_lea.vmem [#allocation2], 4
    %307 = vst.msk [vmem:[%s306] sm:$0xf0] %vm304, %v303
    %s308 = scalar_lea.vmem [#allocation0], 66
    %s309 = smov 3
    %v310 = vld [vmem:[%s308] ss:$16 sm:%s309]
    %s311 = scalar_lea.vmem [#allocation0], 66
    %s312 = smov 12
    %v313 = vld [vmem:[%s311] ss:$16 sm:%s312]
    %vm314 = vcmask 1043458
    %v315 = vsel %vm314, %v313, %v310
    %s316 = scalar_lea.vmem [#allocation0], 10
    %s317 = smov 48
    %v318 = vld [vmem:[%s316] ss:$16 sm:%s317]
    %vm319 = vcmask 1045508
    %v320 = vsel %vm319, %v318, %v315
    %s321 = scalar_lea.vmem [#allocation0], 10
    %s322 = smov 192
    %v323 = vld [vmem:[%s321] ss:$16 sm:%s322]
    %vm324 = vcmask 1047558
    %v325 = vsel %vm324, %v323, %v320
    %326 = vrot.lane.b32.xlu0 %v325, 32
    %v327 = vpop.permute.xlu0 %326
    %vm328 = vcmask 392448
    %s329 = scalar_lea.vmem [#allocation2], 16
    %330 = vst.msk [vmem:[%s329] sm:$0xf] %vm328, %v327
    %s331 = scalar_lea.vmem [#allocation2], 20
    %332 = vst.msk [vmem:[%s331] sm:$0xf0] %vm328, %v327
    %s333 = scalar_lea.vmem [#allocation0], 1
    %s334 = smov 3
    %v335 = vld [vmem:[%s333] ss:$16 sm:%s334]
    %s336 = scalar_lea.vmem [#allocation0], 1
    %s337 = smov 12
    %v338 = vld [vmem:[%s336] ss:$16 sm:%s337]
    %vm339 = vcmask 1043458
    %v340 = vsel %vm339, %v338, %v335
    %s341 = scalar_lea.vmem [#allocation0], 4294967241
    %s342 = smov 48
    %v343 = vld [vmem:[%s341] ss:$16 sm:%s342]
    %vm344 = vcmask 1045508
    %v345 = vsel %vm344, %v343, %v340
    %s346 = scalar_lea.vmem [#allocation0], 4294967241
    %s347 = smov 192
    %v348 = vld [vmem:[%s346] ss:$16 sm:%s347]
    %vm349 = vcmask 1047558
    %v350 = vsel %vm349, %v348, %v345
    %351 = vrot.lane.b32.xlu0 %v350, 16
    %v352 = vpop.permute.xlu0 %351
    %vm353 = vcmask 261248
    %354 = vst.msk [vmem:[#allocation2] sm:$0xf] %vm353, %v352
    %s355 = scalar_lea.vmem [#allocation2], 4
    %356 = vst.msk [vmem:[%s355] sm:$0xf0] %vm353, %v352
    %s357 = scalar_lea.vmem [#allocation0], 65
    %s358 = smov 3
    %v359 = vld [vmem:[%s357] ss:$16 sm:%s358]
    %s360 = scalar_lea.vmem [#allocation0], 65
    %s361 = smov 12
    %v362 = vld [vmem:[%s360] ss:$16 sm:%s361]
    %vm363 = vcmask 1043458
    %v364 = vsel %vm363, %v362, %v359
    %s365 = scalar_lea.vmem [#allocation0], 9
    %s366 = smov 48
    %v367 = vld [vmem:[%s365] ss:$16 sm:%s366]
    %vm368 = vcmask 1045508
    %v369 = vsel %vm368, %v367, %v364
    %s370 = scalar_lea.vmem [#allocation0], 9
    %s371 = smov 192
    %v372 = vld [vmem:[%s370] ss:$16 sm:%s371]
    %vm373 = vcmask 1047558
    %v374 = vsel %vm373, %v372, %v369
    %375 = vrot.lane.b32.xlu0 %v374, 16
    %v376 = vpop.permute.xlu0 %375
    %vm377 = vcmask 261248
    %s378 = scalar_lea.vmem [#allocation2], 16
    %379 = vst.msk [vmem:[%s378] sm:$0xf] %vm377, %v376
    %s380 = scalar_lea.vmem [#allocation2], 20
    %381 = vst.msk [vmem:[%s380] sm:$0xf0] %vm377, %v376
    %s383 = sshllo.u32 0, 4
    %v385 = vld [vmem:[#allocation2] sm:%s383]
    %s386 = sshllo.u32 0, 4
    %387 = vst [vmem:[%s1] sm:%s386] %v385
    %s388 = scalar_lea.vmem [#allocation2], 8
    %v389 = vld [vmem:[%s388] sm:%s383]
    %s390 = sshllo.u32 0, 4
    %s391 = scalar_lea.vmem %s1, 4
    %392 = vst [vmem:[%s391] sm:%s390] %v389
    %s393 = scalar_lea.vmem [#allocation2], 16
    %v394 = vld [vmem:[%s393] sm:%s383]
    %s395 = sshllo.u32 0, 4
    %s396 = smul.addr 4, 2
    %s397 = scalar_lea.vmem %s1, %s396
    %398 = vst [vmem:[%s397] sm:%s395] %v394
    %s399 = scalar_lea.vmem [#allocation2], 24
    %v400 = vld [vmem:[%s399] sm:%s383]
    %s401 = sshllo.u32 0, 4
    %s402 = smul.addr 4, 3
    %s403 = scalar_lea.vmem %s1, %s402
    %404 = vst [vmem:[%s403] sm:%s401] %v400
    %405 = vsyncpa [#allocation1], 1

// kernel: simple_module_forward.1
$region0: #{simple_module_forward.1}
  #allocation0 [shape = 'u32[]', space=smem, size = 0x4, offset = 0x4, fixed_abs, tag = 'smem constant byte address 0x4 - core index']
  #allocation1 [shape = 'u32[144,128]{1,0:T(1,128)}', space=vmem, size = 0x12000, scoped, tag = 'internal scratch']
  %s0 = inlined_call_operand.vmem [shape: f32[2,4,256], index: 0, kind: input, shape index: {}]
  %s1 = inlined_call_operand.vmem [shape: f32[32,4], index: 1, kind: input, shape index: {}]
  %s2 = inlined_call_operand.vmem [shape: f32[1,32], index: 2, kind: input, shape index: {}]
  %s3 = inlined_call_operand.vmem [shape: f32[2,256,32], index: 3, kind: output, shape index: {}]
  %s4 = sld [smem:[#allocation0]]
  $region45: #{simple_module_forward.1} parent=0
    _
  %s6 = ssub.s32 1, %s4
  %s7 = scalar_select 0, %s6, %s4
  loop: start=0, step=1, limit=4
  $region2: #{simple_module_forward.1} parent=0 // loop_pre_header
    _
  $region3: #{simple_module_forward.1} parent=0 // loop_header
    %s9 = sphi 0, %s13
    %p10 = scmp.ge.s32.totalorder %s9, 4
    %s16 = sphi 0, %s28
    %s17 = sphi 0, %s24
    %s18 = sphi 0, %s16
    %s19 = sphi 0, %s17
    %s20 = sphi 0, %s18
    %s21 = sphi 0, %s19
    %s33 = sphi 0, %s35
    %s36 = sphi 0, %s33
    %s37 = sphi 0, %s36
    %s53 = sphi 0, %s37
    %s57 = sphi 0, %s57
    %s59 = sphi 0, %s57
    %s60 = sphi 0, %s59
    %s74 = sphi 0, %s60
    %s78 = sphi 0, %s78
    %s80 = sphi 0, %s78
    %s81 = sphi 0, %s80
    %s95 = sphi 0, %s81
    %s103 = sphi 0, %s105
    %s106 = sphi 0, %s103
    %s107 = sphi 0, %s106
    %s123 = sphi 0, %s107
  $region4: #{simple_module_forward.1} parent=0 // loop_header_branch
    %12 = sbr.rel (%p10) target = $region8
  $region5: #{simple_module_forward.1} parent=0 // loop_body
    %s14 = ssub.s32 %s9, 1
    %s15 = ssub.s32 %s9, 2
    %s22 = sadd.s32 1, %s17
    %p23 = scmp.ge.s32.totalorder %s22, 1
    %s24 = scalar_select %p23, 0, %s22
    %s25 = sadd.s32 1, %s16
    %s26 = scalar_select %p23, %s25, %s16
    %p27 = scmp.ge.s32.totalorder %s26, 2
    %s28 = scalar_select %p27, 0, %s26
    %s29 = ssub.s32 %s16, %s28
    %s30 = ssub.s32 %s17, %s24
    %s31 = sor.u32 %s29, %s30
    %p32 = scmp.eq.s32.totalorder %s31, 0
    %s34 = sadd.s32 %s33, 1
    %s35 = scalar_select %p32, %s33, %s34
    %p38 = pneg %p32
    %p39 = scmp.eq.s32.totalorder %s9, 1
    %p40 = por %p38, %p39
    %p41 = scmp.ne.s32.totalorder %s33, %s36
    %p42 = scmp.eq.s32.totalorder %s9, 0
    %p43 = por %p41, %p42
    %p44 = scmp.ne.s32.totalorder %s33, %s36
    %p45 = scmp.eq.s32.totalorder %s14, 1
    %p46 = por %p44, %p45
    %p47 = scmp.ne.s32.totalorder %s36, %s37
    %p48 = scmp.eq.s32.totalorder %s14, 0
    %p49 = por %p47, %p48
    %p50 = scmp.ne.s32.totalorder %s36, %s37
    %p51 = scmp.eq.s32.totalorder %s15, 1
    %p52 = por %p50, %p51
    %p54 = scmp.ne.s32.totalorder %s37, %s53
    %p55 = scmp.eq.s32.totalorder %s15, 0
    %p56 = por %p54, %p55
    %s58 = sadd.s32 %s57, 1
    %p61 = scmp.eq.s32.totalorder %s9, 1
    %p62 = scmp.ne.s32.totalorder %s57, %s59
    %p63 = scmp.eq.s32.totalorder %s9, 0
    %p64 = por %p62, %p63
    %p65 = scmp.ne.s32.totalorder %s57, %s59
    %p66 = scmp.eq.s32.totalorder %s14, 1
    %p67 = por %p65, %p66
    %p68 = scmp.ne.s32.totalorder %s59, %s60
    %p69 = scmp.eq.s32.totalorder %s14, 0
    %p70 = por %p68, %p69
    %p71 = scmp.ne.s32.totalorder %s59, %s60
    %p72 = scmp.eq.s32.totalorder %s15, 1
    %p73 = por %p71, %p72
    %p75 = scmp.ne.s32.totalorder %s60, %s74
    %p76 = scmp.eq.s32.totalorder %s15, 0
    %p77 = por %p75, %p76
    %s79 = sadd.s32 %s78, 1
    %p82 = scmp.eq.s32.totalorder %s9, 1
    %p83 = scmp.ne.s32.totalorder %s78, %s80
    %p84 = scmp.eq.s32.totalorder %s9, 0
    %p85 = por %p83, %p84
    %p86 = scmp.ne.s32.totalorder %s78, %s80
    %p87 = scmp.eq.s32.totalorder %s14, 1
    %p88 = por %p86, %p87
    %p89 = scmp.ne.s32.totalorder %s80, %s81
    %p90 = scmp.eq.s32.totalorder %s14, 0
    %p91 = por %p89, %p90
    %p92 = scmp.ne.s32.totalorder %s80, %s81
    %p93 = scmp.eq.s32.totalorder %s15, 1
    %p94 = por %p92, %p93
    %p96 = scmp.ne.s32.totalorder %s81, %s95
    %p97 = scmp.eq.s32.totalorder %s15, 0
    %p98 = por %p96, %p97
    %s99 = ssub.s32 %s16, %s28
    %s100 = ssub.s32 %s17, %s24
    %s101 = sor.u32 %s99, %s100
    %p102 = scmp.eq.s32.totalorder %s101, 0
    %s104 = sadd.s32 %s103, 1
    %s105 = scalar_select %p102, %s103, %s104
    %p108 = pneg %p102
    %p109 = scmp.eq.s32.totalorder %s9, 1
    %p110 = por %p108, %p109
    %p111 = scmp.ne.s32.totalorder %s103, %s106
    %p112 = scmp.eq.s32.totalorder %s9, 0
    %p113 = por %p111, %p112
    %p114 = scmp.ne.s32.totalorder %s103, %s106
    %p115 = scmp.eq.s32.totalorder %s14, 1
    %p116 = por %p114, %p115
    %p117 = scmp.ne.s32.totalorder %s106, %s107
    %p118 = scmp.eq.s32.totalorder %s14, 0
    %p119 = por %p117, %p118
    %p120 = scmp.ne.s32.totalorder %s106, %s107
    %p121 = scmp.eq.s32.totalorder %s15, 1
    %p122 = por %p120, %p121
    %p124 = scmp.ne.s32.totalorder %s107, %s123
    %p125 = scmp.eq.s32.totalorder %s15, 0
    %p126 = por %p124, %p125
    %p127 = scmp.le.s32.totalorder 1, %s9
    %p128 = scmp.lt.s32.totalorder %s9, 3
    %p129 = pnand %p127, %p128
    %p130 = pneg %p129
    // Predicated region
    $region9: #{simple_module_forward.1} parent=5 // pred_check
      _
    $region10: #{simple_module_forward.1} parent=5 // pred_check_branch
      %132 = sbr.rel (%p129) target = $region12
    $region11: #{simple_module_forward.1} parent=5 // pred_region
      %s133 = ssub.s32 %s9, 1
      // Predicated region
      $region13: #{simple_module_forward.1} parent=11 // pred_check
        %p134 = pneg %p70
      $region14: #{simple_module_forward.1} parent=11 // pred_check_branch
        %136 = sbr.rel (%p134) target = $region16
      $region15: #{simple_module_forward.1} parent=11 // pred_region
        _
      $region16: #{simple_module_forward.1} parent=11 // pred_fallthru
        _
      // Predicated region
      $region17: #{simple_module_forward.1} parent=11 // pred_check
        %p137 = pneg %p91
      $region18: #{simple_module_forward.1} parent=11 // pred_check_branch
        %139 = sbr.rel (%p137) target = $region20
      $region19: #{simple_module_forward.1} parent=11 // pred_region
        _
      $region20: #{simple_module_forward.1} parent=11 // pred_fallthru
        _
    $region12: #{simple_module_forward.1} parent=5 // pred_fallthru
      _
    %p140 = scmp.lt.s32.totalorder %s9, 2
    // Predicated region
    $region21: #{simple_module_forward.1} parent=5 // pred_check
      %p141 = pneg %p140
    $region22: #{simple_module_forward.1} parent=5 // pred_check_branch
      %143 = sbr.rel (%p141) target = $region24
    $region23: #{simple_module_forward.1} parent=5 // pred_region
      // Predicated region
      $region25: #{simple_module_forward.1} parent=23 // pred_check
        %p144 = pneg %p43
      $region26: #{simple_module_forward.1} parent=23 // pred_check_branch
        %146 = sbr.rel (%p144) target = $region28
      $region27: #{simple_module_forward.1} parent=23 // pred_region
        %s147 = smul.u32 2, %s17
        %p148 = scmp.lt.s32.totalorder %s16, 1
        %s149 = scalar_select %p148, %s16, 1
        %p150 = scmp.lt.s32.totalorder %s147, 1
        %s151 = scalar_select %p150, %s147, 1
        %s152 = smul.addr %s149, 2
        %s153 = sadd.s32 %s151, %s152
        %s154 = smul.addr %s153, 4
        %s155 = scalar_lea.vmem %s0, %s154
        %s156 = smul.u32 2, %s17
      $region28: #{simple_module_forward.1} parent=23 // pred_fallthru
        _
    $region24: #{simple_module_forward.1} parent=5 // pred_fallthru
      _
    %p157 = scmp.le.s32.totalorder 1, %s9
    %p158 = scmp.lt.s32.totalorder %s9, 3
    %p159 = pnand %p157, %p158
    %p160 = pneg %p159
    // Predicated region
    $region29: #{simple_module_forward.1} parent=5 // pred_check
      _
    $region30: #{simple_module_forward.1} parent=5 // pred_check_branch
      %162 = sbr.rel (%p159) target = $region32
    $region31: #{simple_module_forward.1} parent=5 // pred_region
      %s163 = ssub.s32 %s9, 1
      %s164 = smul.u32 2, %s19
      %p165 = scmp.lt.s32.totalorder %s18, 1
      %s166 = scalar_select %p165, %s18, 1
      %p167 = scmp.lt.s32.totalorder %s164, 1
      %s168 = scalar_select %p167, %s164, 1
      %s169 = smul.addr %s166, 2
      %s170 = sadd.s32 %s168, %s169
      %s171 = smul.addr %s170, 4
      %s172 = scalar_lea.vmem %s0, %s171
      %p173 = pneg %p49
      %p174 = pneg %p46
      %p175 = pneg %p70
      %p176 = pneg %p67
      %p177 = pneg %p91
      %p178 = pneg %p88
      %p179 = pneg %p119
      %p180 = pneg %p116
      %s181 = smul.u32 32, %s19
      %p182 = scmp.lt.s32.totalorder %s18, 1
      %s183 = scalar_select %p182, %s18, 1
      %p184 = scmp.lt.s32.totalorder %s181, 31
      %s185 = scalar_select %p184, %s181, 31
      %s186 = smul.addr %s183, 32
      %s187 = sadd.s32 %s185, %s186
      %s188 = smul.addr %s187, 8
      %s189 = scalar_lea.vmem %s3, %s188
      %s190 = smul.u32 2, %s19
      %p191 = scmp.lt.s32.totalorder %s18, 1
      %s192 = scalar_select %p191, %s18, 1
      %p193 = scmp.lt.s32.totalorder %s190, 1
      %s194 = scalar_select %p193, %s190, 1
      %s195 = smul.addr %s192, 2
      %s196 = sadd.s32 %s194, %s195
      %s197 = smul.addr %s196, 4
      %s198 = scalar_lea.vmem %s0, %s197
      %s199 = smul.u32 2, %s19
      %s200 = smul.u32 32, %s19
      %p201 = scmp.lt.s32.totalorder %s18, 1
      %s202 = scalar_select %p201, %s18, 1
      %p203 = scmp.lt.s32.totalorder %s200, 31
      %s204 = scalar_select %p203, %s200, 31
      %s205 = smul.addr %s202, 32
      %s206 = sadd.s32 %s204, %s205
      %s207 = smul.addr %s206, 8
      %s208 = scalar_lea.vmem %s3, %s207
      %s209 = smul.u32 32, %s19
      %v210 = vld [vmem:[%s198] sm:$0xff]
      %v211 = vld [vmem:[%s1] sm:$0xff]
      %v212 = vld [vmem:[%s1 + $0x8] sm:$0xff]
      %v213 = vld [vmem:[%s1 + $0x10] sm:$0xff]
      %v214 = vld [vmem:[%s1 + $0x18] sm:$0xff]
      %v216 = vcombine.high %v210, %v210
      %vm217 = vcmask 31744
      %v219 = vsel %vm217, %v211, 0
      %v222 = vsel %vm217, %v212, 0
      %v225 = vsel %vm217, %v213, 0
      %v228 = vsel %vm217, %v214, 0
      %vm230 = vcmask 1043456
      %v231 = vsel %vm230, %v210, 0
      %v233 = vsel %vm230, %v216, 0
      %v235 = vand.u32 %v233, 4294901760
      %236 = vmatprep.subr.mxu0 %v235
      %v237 = vand.u32 %v231, 4294901760
      %238 = vmatpush1.msra.mxu0 %v237
      %239 = vmatprep.subr.mxu0 0.0
      %240 = vmatpush1.msra.mxu0 0.0
      %241 = vmatprep.subr.mxu0 0.0
      %242 = vmatpush1.msra.mxu0 0.0
      %243 = vmatprep.subr.mxu0 0.0
      %244 = vmatpush1.msra.mxu0 0.0
      %245 = vmatprep.subr.mxu0 0.0
      %246 = vmatpush1.msra.mxu0 0.0
      %247 = vmatprep.subr.mxu0 0.0
      %248 = vmatpush1.msra.mxu0 0.0
      %249 = vmatprep.subr.mxu0 0.0
      %250 = vmatpush1.msra.mxu0 0.0
      %251 = vmatprep.subr.mxu0 0.0
      %252 = vmatpush1.msra.mxu0 0.0
      %253 = vmatprep.subr.mxu0 0.0
      %254 = vmatpush1.msra.mxu0 0.0
      %255 = vmatprep.subr.mxu0 0.0
      %256 = vmatpush1.msra.mxu0 0.0
      %257 = vmatprep.subr.mxu0 0.0
      %258 = vmatpush1.msra.mxu0 0.0
      %259 = vmatprep.subr.mxu0 0.0
      %260 = vmatpush1.msra.mxu0 0.0
      %261 = vmatprep.subr.mxu0 0.0
      %262 = vmatpush1.msra.mxu0 0.0
      %263 = vmatprep.subr.mxu0 0.0
      %264 = vmatpush1.msra.mxu0 0.0
      %265 = vmatprep.subr.mxu0 0.0
      %266 = vmatpush1.msra.mxu0 0.0
      %267 = vmatprep.subr.mxu0 0.0
      %268 = vmatpush1.msra.mxu0 0.0
      %269 = vmatprep.subr.mxu0 0.0
      %270 = vmatpush1.msra.mxu0 0.0
      %271 = vmatprep.subr.mxu0 0.0
      %272 = vmatpush1.msra.mxu0 0.0
      %273 = vmatprep.subr.mxu0 0.0
      %274 = vmatpush1.msra.mxu0 0.0
      %275 = vmatprep.subr.mxu0 0.0
      %276 = vmatpush1.msra.mxu0 0.0
      %277 = vmatprep.subr.mxu0 0.0
      %278 = vmatpush1.msra.mxu0 0.0
      %279 = vmatprep.subr.mxu0 0.0
      %280 = vmatpush1.msra.mxu0 0.0
      %281 = vmatprep.subr.mxu0 0.0
      %282 = vmatpush1.msra.mxu0 0.0
      %283 = vmatprep.subr.mxu0 0.0
      %284 = vmatpush1.msra.mxu0 0.0
      %285 = vmatprep.subr.mxu0 0.0
      %286 = vmatpush1.msra.mxu0 0.0
      %287 = vmatprep.subr.mxu0 0.0
      %288 = vmatpush1.msra.mxu0 0.0
      %289 = vmatprep.subr.mxu0 0.0
      %290 = vmatpush1.msra.mxu0 0.0
      %291 = vmatprep.subr.mxu0 0.0
      %292 = vmatpush1.msra.mxu0 0.0
      %293 = vmatprep.subr.mxu0 0.0
      %294 = vmatpush1.msra.mxu0 0.0
      %295 = vmatprep.subr.mxu0 0.0
      %296 = vmatpush1.msra.mxu0 0.0
      %297 = vmatprep.subr.mxu0 0.0
      %298 = vmatpush1.msra.mxu0 0.0
      %299 = vmatprep.subr.mxu0 0.0
      %300 = vmatpush1.msra.mxu0 0.0
      %301 = vmatprep.mubr.f32.mxu0 0.0
      %v302 = vand.u32 %v219, 4294901760
      %v303 = vsub.f32 %v219, %v302
      %v304 = vand.u32 %v303, 4294901760
      %v305 = vsub.f32 %v303, %v304
      %v306 = vand.u32 %v305, 4294901760
      %307 = vmatmul.mubr.f32.gmra.mrb[0].mxu0 %v306
      %v308 = vpop.f32.mrb[0].mxu0
      %v309 = vadd.f32 0.0, %v308
      %v310 = vpop.f32.mrb[0].mxu0
      %v311 = vadd.f32 0.0, %v310
      %312 = vmatprep.mubr.f32.mxu0 0.0
      %v313 = vand.u32 %v222, 4294901760
      %v314 = vsub.f32 %v222, %v313
      %v315 = vand.u32 %v314, 4294901760
      %v316 = vsub.f32 %v314, %v315
      %v317 = vand.u32 %v316, 4294901760
      %318 = vmatmul.mubr.f32.gmra.mrb[0].mxu0 %v317
      %v319 = vpop.f32.mrb[0].mxu0
      %v320 = vadd.f32 0.0, %v319
      %v321 = vpop.f32.mrb[0].mxu0
      %v322 = vadd.f32 0.0, %v321
      %323 = vmatprep.mubr.f32.mxu0 0.0
      %v324 = vand.u32 %v225, 4294901760
      %v325 = vsub.f32 %v225, %v324
      %v326 = vand.u32 %v325, 4294901760
      %v327 = vsub.f32 %v325, %v326
      %v328 = vand.u32 %v327, 4294901760
      %329 = vmatmul.mubr.f32.gmra.mrb[0].mxu0 %v328
      %v330 = vpop.f32.mrb[0].mxu0
      %v331 = vadd.f32 0.0, %v330
      %v332 = vpop.f32.mrb[0].mxu0
      %v333 = vadd.f32 0.0, %v332
      %334 = vmatprep.mubr.f32.mxu0 0.0
      %v335 = vand.u32 %v228, 4294901760
      %v336 = vsub.f32 %v228, %v335
      %v337 = vand.u32 %v336, 4294901760
      %v338 = vsub.f32 %v336, %v337
      %v339 = vand.u32 %v338, 4294901760
      %340 = vmatmul.mubr.f32.gmra.mrb[0].mxu0 %v339
      %v341 = vpop.f32.mrb[0].mxu0
      %v342 = vadd.f32 0.0, %v341
      %v343 = vpop.f32.mrb[0].mxu0
      %v344 = vadd.f32 0.0, %v343
      %345 = vdwg.mxu0
      %v346 = vand.u32 %v233, 4294901760
      %v347 = vsub.f32 %v233, %v346
      %v348 = vand.u32 %v347, 4294901760
      %v349 = vsub.f32 %v347, %v348
      %v350 = vand.u32 %v349, 4294901760
      %351 = vmatprep.subr.mxu0 %v350
      %v352 = vand.u32 %v231, 4294901760
      %v353 = vsub.f32 %v231, %v352
      %v354 = vand.u32 %v353, 4294901760
      %v355 = vsub.f32 %v353, %v354
      %v356 = vand.u32 %v355, 4294901760
      %357 = vmatpush1.msra.mxu0 %v356
      %358 = vmatprep.subr.mxu0 0.0
      %359 = vmatpush1.msra.mxu0 0.0
      %360 = vmatprep.subr.mxu0 0.0
      %361 = vmatpush1.msra.mxu0 0.0
      %362 = vmatprep.subr.mxu0 0.0
      %363 = vmatpush1.msra.mxu0 0.0
      %364 = vmatprep.subr.mxu0 0.0
      %365 = vmatpush1.msra.mxu0 0.0
      %366 = vmatprep.subr.mxu0 0.0
      %367 = vmatpush1.msra.mxu0 0.0
      %368 = vmatprep.subr.mxu0 0.0
      %369 = vmatpush1.msra.mxu0 0.0
      %370 = vmatprep.subr.mxu0 0.0
      %371 = vmatpush1.msra.mxu0 0.0
      %372 = vmatprep.subr.mxu0 0.0
      %373 = vmatpush1.msra.mxu0 0.0
      %374 = vmatprep.subr.mxu0 0.0
      %375 = vmatpush1.msra.mxu0 0.0
      %376 = vmatprep.subr.mxu0 0.0
      %377 = vmatpush1.msra.mxu0 0.0
      %378 = vmatprep.subr.mxu0 0.0
      %379 = vmatpush1.msra.mxu0 0.0
      %380 = vmatprep.subr.mxu0 0.0
      %381 = vmatpush1.msra.mxu0 0.0
      %382 = vmatprep.subr.mxu0 0.0
      %383 = vmatpush1.msra.mxu0 0.0
      %384 = vmatprep.subr.mxu0 0.0
      %385 = vmatpush1.msra.mxu0 0.0
      %386 = vmatprep.subr.mxu0 0.0
      %387 = vmatpush1.msra.mxu0 0.0
      %388 = vmatprep.subr.mxu0 0.0
      %389 = vmatpush1.msra.mxu0 0.0
      %390 = vmatprep.subr.mxu0 0.0
      %391 = vmatpush1.msra.mxu0 0.0
      %392 = vmatprep.subr.mxu0 0.0
      %393 = vmatpush1.msra.mxu0 0.0
      %394 = vmatprep.subr.mxu0 0.0
      %395 = vmatpush1.msra.mxu0 0.0
      %396 = vmatprep.subr.mxu0 0.0
      %397 = vmatpush1.msra.mxu0 0.0
      %398 = vmatprep.subr.mxu0 0.0
      %399 = vmatpush1.msra.mxu0 0.0
      %400 = vmatprep.subr.mxu0 0.0
      %401 = vmatpush1.msra.mxu0 0.0
      %402 = vmatprep.subr.mxu0 0.0
      %403 = vmatpush1.msra.mxu0 0.0
      %404 = vmatprep.subr.mxu0 0.0
      %405 = vmatpush1.msra.mxu0 0.0
      %406 = vmatprep.subr.mxu0 0.0
      %407 = vmatpush1.msra.mxu0 0.0
      %408 = vmatprep.subr.mxu0 0.0
      %409 = vmatpush1.msra.mxu0 0.0
      %410 = vmatprep.subr.mxu0 0.0
      %411 = vmatpush1.msra.mxu0 0.0
      %412 = vmatprep.subr.mxu0 0.0
      %413 = vmatpush1.msra.mxu0 0.0
      %414 = vmatprep.subr.mxu0 0.0
      %415 = vmatpush1.msra.mxu0 0.0
      %416 = vmatprep.subr.mxu0 0.0
      %417 = vmatpush1.msra.mxu0 0.0
      %418 = vmatprep.subr.mxu0 0.0
      %419 = vmatpush1.msra.mxu0 0.0
      %420 = vmatprep.mubr.f32.mxu0 0.0
      %v421 = vand.u32 %v219, 4294901760
      %422 = vmatmul.mubr.f32.gmra.mrb[0].mxu0 %v421
      %v423 = vpop.f32.mrb[0].mxu0
      %v424 = vadd.f32 %v309, %v423
      %v425 = vpop.f32.mrb[0].mxu0
      %v426 = vadd.f32 %v311, %v425
      %427 = vmatprep.mubr.f32.mxu0 0.0
      %v428 = vand.u32 %v222, 4294901760
      %429 = vmatmul.mubr.f32.gmra.mrb[0].mxu0 %v428
      %v430 = vpop.f32.mrb[0].mxu0
      %v431 = vadd.f32 %v320, %v430
      %v432 = vpop.f32.mrb[0].mxu0
      %v433 = vadd.f32 %v322, %v432
      %434 = vmatprep.mubr.f32.mxu0 0.0
      %v435 = vand.u32 %v225, 4294901760
      %436 = vmatmul.mubr.f32.gmra.mrb[0].mxu0 %v435
      %v437 = vpop.f32.mrb[0].mxu0
      %v438 = vadd.f32 %v331, %v437
      %v439 = vpop.f32.mrb[0].mxu0
      %v440 = vadd.f32 %v333, %v439
      %441 = vmatprep.mubr.f32.mxu0 0.0
      %v442 = vand.u32 %v228, 4294901760
      %443 = vmatmul.mubr.f32.gmra.mrb[0].mxu0 %v442
      %v444 = vpop.f32.mrb[0].mxu0
      %v445 = vadd.f32 %v342, %v444
      %v446 = vpop.f32.mrb[0].mxu0
      %v447 = vadd.f32 %v344, %v446
      %448 = vdwg.mxu0
      %v449 = vand.u32 %v233, 4294901760
      %v450 = vsub.f32 %v233, %v449
      %451 = vmatprep.subr.mxu0 %v450
      %v452 = vand.u32 %v231, 4294901760
      %v453 = vsub.f32 %v231, %v452
      %454 = vmatpush1.msra.mxu0 %v453
      %455 = vmatprep.subr.mxu0 0.0
      %456 = vmatpush1.msra.mxu0 0.0
      %457 = vmatprep.subr.mxu0 0.0
      %458 = vmatpush1.msra.mxu0 0.0
      %459 = vmatprep.subr.mxu0 0.0
      %460 = vmatpush1.msra.mxu0 0.0
      %461 = vmatprep.subr.mxu0 0.0
      %462 = vmatpush1.msra.mxu0 0.0
      %463 = vmatprep.subr.mxu0 0.0
      %464 = vmatpush1.msra.mxu0 0.0
      %465 = vmatprep.subr.mxu0 0.0
      %466 = vmatpush1.msra.mxu0 0.0
      %467 = vmatprep.subr.mxu0 0.0
      %468 = vmatpush1.msra.mxu0 0.0
      %469 = vmatprep.subr.mxu0 0.0
      %470 = vmatpush1.msra.mxu0 0.0
      %471 = vmatprep.subr.mxu0 0.0
      %472 = vmatpush1.msra.mxu0 0.0
      %473 = vmatprep.subr.mxu0 0.0
      %474 = vmatpush1.msra.mxu0 0.0
      %475 = vmatprep.subr.mxu0 0.0
      %476 = vmatpush1.msra.mxu0 0.0
      %477 = vmatprep.subr.mxu0 0.0
      %478 = vmatpush1.msra.mxu0 0.0
      %479 = vmatprep.subr.mxu0 0.0
      %480 = vmatpush1.msra.mxu0 0.0
      %481 = vmatprep.subr.mxu0 0.0
      %482 = vmatpush1.msra.mxu0 0.0
      %483 = vmatprep.subr.mxu0 0.0
      %484 = vmatpush1.msra.mxu0 0.0
      %485 = vmatprep.subr.mxu0 0.0
      %486 = vmatpush1.msra.mxu0 0.0
      %487 = vmatprep.subr.mxu0 0.0
      %488 = vmatpush1.msra.mxu0 0.0
      %489 = vmatprep.subr.mxu0 0.0
      %490 = vmatpush1.msra.mxu0 0.0
      %491 = vmatprep.subr.mxu0 0.0
      %492 = vmatpush1.msra.mxu0 0.0
      %493 = vmatprep.subr.mxu0 0.0
      %494 = vmatpush1.msra.mxu0 0.0
      %495 = vmatprep.subr.mxu0 0.0
      %496 = vmatpush1.msra.mxu0 0.0
      %497 = vmatprep.subr.mxu0 0.0
      %498 = vmatpush1.msra.mxu0 0.0
      %499 = vmatprep.subr.mxu0 0.0
      %500 = vmatpush1.msra.mxu0 0.0
      %501 = vmatprep.subr.mxu0 0.0
      %502 = vmatpush1.msra.mxu0 0.0
      %503 = vmatprep.subr.mxu0 0.0
      %504 = vmatpush1.msra.mxu0 0.0
      %505 = vmatprep.subr.mxu0 0.0
      %506 = vmatpush1.msra.mxu0 0.0
      %507 = vmatprep.subr.mxu0 0.0
      %508 = vmatpush1.msra.mxu0 0.0
      %509 = vmatprep.subr.mxu0 0.0
      %510 = vmatpush1.msra.mxu0 0.0
      %511 = vmatprep.subr.mxu0 0.0
      %512 = vmatpush1.msra.mxu0 0.0
      %513 = vmatprep.subr.mxu0 0.0
      %514 = vmatpush1.msra.mxu0 0.0
      %515 = vmatprep.subr.mxu0 0.0
      %516 = vmatpush1.msra.mxu0 0.0
      %517 = vmatprep.mubr.f32.mxu0 0.0
      %v518 = vand.u32 %v219, 4294901760
      %v519 = vsub.f32 %v219, %v518
      %520 = vmatmul.mubr.f32.gmra.mrb[0].mxu0 %v519
      %v521 = vpop.f32.mrb[0].mxu0
      %v522 = vadd.f32 %v424, %v521
      %v523 = vpop.f32.mrb[0].mxu0
      %v524 = vadd.f32 %v426, %v523
      %525 = vmatprep.mubr.f32.mxu0 0.0
      %v526 = vand.u32 %v222, 4294901760
      %v527 = vsub.f32 %v222, %v526
      %528 = vmatmul.mubr.f32.gmra.mrb[0].mxu0 %v527
      %v529 = vpop.f32.mrb[0].mxu0
      %v530 = vadd.f32 %v431, %v529
      %v531 = vpop.f32.mrb[0].mxu0
      %v532 = vadd.f32 %v433, %v531
      %533 = vmatprep.mubr.f32.mxu0 0.0
      %v534 = vand.u32 %v225, 4294901760
      %v535 = vsub.f32 %v225, %v534
      %536 = vmatmul.mubr.f32.gmra.mrb[0].mxu0 %v535
      %v537 = vpop.f32.mrb[0].mxu0
      %v538 = vadd.f32 %v438, %v537
      %v539 = vpop.f32.mrb[0].mxu0
      %v540 = vadd.f32 %v440, %v539
      %541 = vmatprep.mubr.f32.mxu0 0.0
      %v542 = vand.u32 %v228, 4294901760
      %v543 = vsub.f32 %v228, %v542
      %544 = vmatmul.mubr.f32.gmra.mrb[0].mxu0 %v543
      %v545 = vpop.f32.mrb[0].mxu0
      %v546 = vadd.f32 %v445, %v545
      %v547 = vpop.f32.mrb[0].mxu0
      %v548 = vadd.f32 %v447, %v547
      %549 = vdwg.mxu0
      %v550 = vand.u32 %v233, 4294901760
      %551 = vmatprep.subr.mxu0 %v550
      %v552 = vand.u32 %v231, 4294901760
      %553 = vmatpush1.msra.mxu0 %v552
      %554 = vmatprep.subr.mxu0 0.0
      %555 = vmatpush1.msra.mxu0 0.0
      %556 = vmatprep.subr.mxu0 0.0
      %557 = vmatpush1.msra.mxu0 0.0
      %558 = vmatprep.subr.mxu0 0.0
      %559 = vmatpush1.msra.mxu0 0.0
      %560 = vmatprep.subr.mxu0 0.0
      %561 = vmatpush1.msra.mxu0 0.0
      %562 = vmatprep.subr.mxu0 0.0
      %563 = vmatpush1.msra.mxu0 0.0
      %564 = vmatprep.subr.mxu0 0.0
      %565 = vmatpush1.msra.mxu0 0.0
      %566 = vmatprep.subr.mxu0 0.0
      %567 = vmatpush1.msra.mxu0 0.0
      %568 = vmatprep.subr.mxu0 0.0
      %569 = vmatpush1.msra.mxu0 0.0
      %570 = vmatprep.subr.mxu0 0.0
      %571 = vmatpush1.msra.mxu0 0.0
      %572 = vmatprep.subr.mxu0 0.0
      %573 = vmatpush1.msra.mxu0 0.0
      %574 = vmatprep.subr.mxu0 0.0
      %575 = vmatpush1.msra.mxu0 0.0
      %576 = vmatprep.subr.mxu0 0.0
      %577 = vmatpush1.msra.mxu0 0.0
      %578 = vmatprep.subr.mxu0 0.0
      %579 = vmatpush1.msra.mxu0 0.0
      %580 = vmatprep.subr.mxu0 0.0
      %581 = vmatpush1.msra.mxu0 0.0
      %582 = vmatprep.subr.mxu0 0.0
      %583 = vmatpush1.msra.mxu0 0.0
      %584 = vmatprep.subr.mxu0 0.0
      %585 = vmatpush1.msra.mxu0 0.0
      %586 = vmatprep.subr.mxu0 0.0
      %587 = vmatpush1.msra.mxu0 0.0
      %588 = vmatprep.subr.mxu0 0.0
      %589 = vmatpush1.msra.mxu0 0.0
      %590 = vmatprep.subr.mxu0 0.0
      %591 = vmatpush1.msra.mxu0 0.0
      %592 = vmatprep.subr.mxu0 0.0
      %593 = vmatpush1.msra.mxu0 0.0
      %594 = vmatprep.subr.mxu0 0.0
      %595 = vmatpush1.msra.mxu0 0.0
      %596 = vmatprep.subr.mxu0 0.0
      %597 = vmatpush1.msra.mxu0 0.0
      %598 = vmatprep.subr.mxu0 0.0
      %599 = vmatpush1.msra.mxu0 0.0
      %600 = vmatprep.subr.mxu0 0.0
      %601 = vmatpush1.msra.mxu0 0.0
      %602 = vmatprep.subr.mxu0 0.0
      %603 = vmatpush1.msra.mxu0 0.0
      %604 = vmatprep.subr.mxu0 0.0
      %605 = vmatpush1.msra.mxu0 0.0
      %606 = vmatprep.subr.mxu0 0.0
      %607 = vmatpush1.msra.mxu0 0.0
      %608 = vmatprep.subr.mxu0 0.0
      %609 = vmatpush1.msra.mxu0 0.0
      %610 = vmatprep.subr.mxu0 0.0
      %611 = vmatpush1.msra.mxu0 0.0
      %612 = vmatprep.subr.mxu0 0.0
      %613 = vmatpush1.msra.mxu0 0.0
      %614 = vmatprep.subr.mxu0 0.0
      %615 = vmatpush1.msra.mxu0 0.0
      %616 = vmatprep.mubr.f32.mxu0 0.0
      %v617 = vand.u32 %v219, 4294901760
      %v618 = vsub.f32 %v219, %v617
      %v619 = vand.u32 %v618, 4294901760
      %620 = vmatmul.mubr.f32.gmra.mrb[0].mxu0 %v619
      %v621 = vpop.f32.mrb[0].mxu0
      %v622 = vadd.f32 %v522, %v621
      %v623 = vpop.f32.mrb[0].mxu0
      %v624 = vadd.f32 %v524, %v623
      %625 = vmatprep.mubr.f32.mxu0 0.0
      %v626 = vand.u32 %v222, 4294901760
      %v627 = vsub.f32 %v222, %v626
      %v628 = vand.u32 %v627, 4294901760
      %629 = vmatmul.mubr.f32.gmra.mrb[0].mxu0 %v628
      %v630 = vpop.f32.mrb[0].mxu0
      %v631 = vadd.f32 %v530, %v630
      %v632 = vpop.f32.mrb[0].mxu0
      %v633 = vadd.f32 %v532, %v632
      %634 = vmatprep.mubr.f32.mxu0 0.0
      %v635 = vand.u32 %v225, 4294901760
      %v636 = vsub.f32 %v225, %v635
      %v637 = vand.u32 %v636, 4294901760
      %638 = vmatmul.mubr.f32.gmra.mrb[0].mxu0 %v637
      %v639 = vpop.f32.mrb[0].mxu0
      %v640 = vadd.f32 %v538, %v639
      %v641 = vpop.f32.mrb[0].mxu0
      %v642 = vadd.f32 %v540, %v641
      %643 = vmatprep.mubr.f32.mxu0 0.0
      %v644 = vand.u32 %v228, 4294901760
      %v645 = vsub.f32 %v228, %v644
      %v646 = vand.u32 %v645, 4294901760
      %647 = vmatmul.mubr.f32.gmra.mrb[0].mxu0 %v646
      %v648 = vpop.f32.mrb[0].mxu0
      %v649 = vadd.f32 %v546, %v648
      %v650 = vpop.f32.mrb[0].mxu0
      %v651 = vadd.f32 %v548, %v650
      %652 = vdwg.mxu0
      %v653 = vand.u32 %v233, 4294901760
      %v654 = vsub.f32 %v233, %v653
      %v655 = vand.u32 %v654, 4294901760
      %656 = vmatprep.subr.mxu0 %v655
      %v657 = vand.u32 %v231, 4294901760
      %v658 = vsub.f32 %v231, %v657
      %v659 = vand.u32 %v658, 4294901760
      %660 = vmatpush1.msra.mxu0 %v659
      %661 = vmatprep.subr.mxu0 0.0
      %662 = vmatpush1.msra.mxu0 0.0
      %663 = vmatprep.subr.mxu0 0.0
      %664 = vmatpush1.msra.mxu0 0.0
      %665 = vmatprep.subr.mxu0 0.0
      %666 = vmatpush1.msra.mxu0 0.0
      %667 = vmatprep.subr.mxu0 0.0
      %668 = vmatpush1.msra.mxu0 0.0
      %669 = vmatprep.subr.mxu0 0.0
      %670 = vmatpush1.msra.mxu0 0.0
      %671 = vmatprep.subr.mxu0 0.0
      %672 = vmatpush1.msra.mxu0 0.0
      %673 = vmatprep.subr.mxu0 0.0
      %674 = vmatpush1.msra.mxu0 0.0
      %675 = vmatprep.subr.mxu0 0.0
      %676 = vmatpush1.msra.mxu0 0.0
      %677 = vmatprep.subr.mxu0 0.0
      %678 = vmatpush1.msra.mxu0 0.0
      %679 = vmatprep.subr.mxu0 0.0
      %680 = vmatpush1.msra.mxu0 0.0
      %681 = vmatprep.subr.mxu0 0.0
      %682 = vmatpush1.msra.mxu0 0.0
      %683 = vmatprep.subr.mxu0 0.0
      %684 = vmatpush1.msra.mxu0 0.0
      %685 = vmatprep.subr.mxu0 0.0
      %686 = vmatpush1.msra.mxu0 0.0
      %687 = vmatprep.subr.mxu0 0.0
      %688 = vmatpush1.msra.mxu0 0.0
      %689 = vmatprep.subr.mxu0 0.0
      %690 = vmatpush1.msra.mxu0 0.0
      %691 = vmatprep.subr.mxu0 0.0
      %692 = vmatpush1.msra.mxu0 0.0
      %693 = vmatprep.subr.mxu0 0.0
      %694 = vmatpush1.msra.mxu0 0.0
      %695 = vmatprep.subr.mxu0 0.0
      %696 = vmatpush1.msra.mxu0 0.0
      %697 = vmatprep.subr.mxu0 0.0
      %698 = vmatpush1.msra.mxu0 0.0
      %699 = vmatprep.subr.mxu0 0.0
      %700 = vmatpush1.msra.mxu0 0.0
      %701 = vmatprep.subr.mxu0 0.0
      %702 = vmatpush1.msra.mxu0 0.0
      %703 = vmatprep.subr.mxu0 0.0
      %704 = vmatpush1.msra.mxu0 0.0
      %705 = vmatprep.subr.mxu0 0.0
      %706 = vmatpush1.msra.mxu0 0.0
      %707 = vmatprep.subr.mxu0 0.0
      %708 = vmatpush1.msra.mxu0 0.0
      %709 = vmatprep.subr.mxu0 0.0
      %710 = vmatpush1.msra.mxu0 0.0
      %711 = vmatprep.subr.mxu0 0.0
      %712 = vmatpush1.msra.mxu0 0.0
      %713 = vmatprep.subr.mxu0 0.0
      %714 = vmatpush1.msra.mxu0 0.0
      %715 = vmatprep.subr.mxu0 0.0
      %716 = vmatpush1.msra.mxu0 0.0
      %717 = vmatprep.subr.mxu0 0.0
      %718 = vmatpush1.msra.mxu0 0.0
      %719 = vmatprep.subr.mxu0 0.0
      %720 = vmatpush1.msra.mxu0 0.0
      %721 = vmatprep.subr.mxu0 0.0
      %722 = vmatpush1.msra.mxu0 0.0
      %723 = vmatprep.mubr.f32.mxu0 0.0
      %v724 = vand.u32 %v219, 4294901760
      %725 = vmatmul.mubr.f32.gmra.mrb[0].mxu0 %v724
      %v726 = vpop.f32.mrb[0].mxu0
      %v727 = vadd.f32 %v622, %v726
      %v728 = vpop.f32.mrb[0].mxu0
      %v729 = vadd.f32 %v624, %v728
      %730 = vmatprep.mubr.f32.mxu0 0.0
      %v731 = vand.u32 %v222, 4294901760
      %732 = vmatmul.mubr.f32.gmra.mrb[0].mxu0 %v731
      %v733 = vpop.f32.mrb[0].mxu0
      %v734 = vadd.f32 %v631, %v733
      %v735 = vpop.f32.mrb[0].mxu0
      %v736 = vadd.f32 %v633, %v735
      %737 = vmatprep.mubr.f32.mxu0 0.0
      %v738 = vand.u32 %v225, 4294901760
      %739 = vmatmul.mubr.f32.gmra.mrb[0].mxu0 %v738
      %v740 = vpop.f32.mrb[0].mxu0
      %v741 = vadd.f32 %v640, %v740
      %v742 = vpop.f32.mrb[0].mxu0
      %v743 = vadd.f32 %v642, %v742
      %744 = vmatprep.mubr.f32.mxu0 0.0
      %v745 = vand.u32 %v228, 4294901760
      %746 = vmatmul.mubr.f32.gmra.mrb[0].mxu0 %v745
      %v747 = vpop.f32.mrb[0].mxu0
      %v748 = vadd.f32 %v649, %v747
      %v749 = vpop.f32.mrb[0].mxu0
      %v750 = vadd.f32 %v651, %v749
      %751 = vdwg.mxu0
      %v752 = vand.u32 %v233, 4294901760
      %753 = vmatprep.subr.mxu0 %v752
      %v754 = vand.u32 %v231, 4294901760
      %755 = vmatpush1.msra.mxu0 %v754
      %756 = vmatprep.subr.mxu0 0.0
      %757 = vmatpush1.msra.mxu0 0.0
      %758 = vmatprep.subr.mxu0 0.0
      %759 = vmatpush1.msra.mxu0 0.0
      %760 = vmatprep.subr.mxu0 0.0
      %761 = vmatpush1.msra.mxu0 0.0
      %762 = vmatprep.subr.mxu0 0.0
      %763 = vmatpush1.msra.mxu0 0.0
      %764 = vmatprep.subr.mxu0 0.0
      %765 = vmatpush1.msra.mxu0 0.0
      %766 = vmatprep.subr.mxu0 0.0
      %767 = vmatpush1.msra.mxu0 0.0
      %768 = vmatprep.subr.mxu0 0.0
      %769 = vmatpush1.msra.mxu0 0.0
      %770 = vmatprep.subr.mxu0 0.0
      %771 = vmatpush1.msra.mxu0 0.0
      %772 = vmatprep.subr.mxu0 0.0
      %773 = vmatpush1.msra.mxu0 0.0
      %774 = vmatprep.subr.mxu0 0.0
      %775 = vmatpush1.msra.mxu0 0.0
      %776 = vmatprep.subr.mxu0 0.0
      %777 = vmatpush1.msra.mxu0 0.0
      %778 = vmatprep.subr.mxu0 0.0
      %779 = vmatpush1.msra.mxu0 0.0
      %780 = vmatprep.subr.mxu0 0.0
      %781 = vmatpush1.msra.mxu0 0.0
      %782 = vmatprep.subr.mxu0 0.0
      %783 = vmatpush1.msra.mxu0 0.0
      %784 = vmatprep.subr.mxu0 0.0
      %785 = vmatpush1.msra.mxu0 0.0
      %786 = vmatprep.subr.mxu0 0.0
      %787 = vmatpush1.msra.mxu0 0.0
      %788 = vmatprep.subr.mxu0 0.0
      %789 = vmatpush1.msra.mxu0 0.0
      %790 = vmatprep.subr.mxu0 0.0
      %791 = vmatpush1.msra.mxu0 0.0
      %792 = vmatprep.subr.mxu0 0.0
      %793 = vmatpush1.msra.mxu0 0.0
      %794 = vmatprep.subr.mxu0 0.0
      %795 = vmatpush1.msra.mxu0 0.0
      %796 = vmatprep.subr.mxu0 0.0
      %797 = vmatpush1.msra.mxu0 0.0
      %798 = vmatprep.subr.mxu0 0.0
      %799 = vmatpush1.msra.mxu0 0.0
      %800 = vmatprep.subr.mxu0 0.0
      %801 = vmatpush1.msra.mxu0 0.0
      %802 = vmatprep.subr.mxu0 0.0
      %803 = vmatpush1.msra.mxu0 0.0
      %804 = vmatprep.subr.mxu0 0.0
      %805 = vmatpush1.msra.mxu0 0.0
      %806 = vmatprep.subr.mxu0 0.0
      %807 = vmatpush1.msra.mxu0 0.0
      %808 = vmatprep.subr.mxu0 0.0
      %809 = vmatpush1.msra.mxu0 0.0
      %810 = vmatprep.subr.mxu0 0.0
      %811 = vmatpush1.msra.mxu0 0.0
      %812 = vmatprep.subr.mxu0 0.0
      %813 = vmatpush1.msra.mxu0 0.0
      %814 = vmatprep.subr.mxu0 0.0
      %815 = vmatpush1.msra.mxu0 0.0
      %816 = vmatprep.subr.mxu0 0.0
      %817 = vmatpush1.msra.mxu0 0.0
      %818 = vmatprep.mubr.f32.mxu0 0.0
      %v819 = vand.u32 %v219, 4294901760
      %820 = vmatmul.mubr.f32.gmra.mrb[0].mxu0 %v819
      %v821 = vpop.f32.mrb[0].mxu0
      %v822 = vadd.f32 %v727, %v821
      %v823 = vpop.f32.mrb[0].mxu0
      %v824 = vadd.f32 %v729, %v823
      %825 = vmatprep.mubr.f32.mxu0 0.0
      %v826 = vand.u32 %v222, 4294901760
      %827 = vmatmul.mubr.f32.gmra.mrb[0].mxu0 %v826
      %v828 = vpop.f32.mrb[0].mxu0
      %v829 = vadd.f32 %v734, %v828
      %v830 = vpop.f32.mrb[0].mxu0
      %v831 = vadd.f32 %v736, %v830
      %832 = vmatprep.mubr.f32.mxu0 0.0
      %v833 = vand.u32 %v225, 4294901760
      %834 = vmatmul.mubr.f32.gmra.mrb[0].mxu0 %v833
      %v835 = vpop.f32.mrb[0].mxu0
      %v836 = vadd.f32 %v741, %v835
      %v837 = vpop.f32.mrb[0].mxu0
      %v838 = vadd.f32 %v743, %v837
      %839 = vmatprep.mubr.f32.mxu0 0.0
      %v840 = vand.u32 %v228, 4294901760
      %841 = vmatmul.mubr.f32.gmra.mrb[0].mxu0 %v840
      %v842 = vpop.f32.mrb[0].mxu0
      %v843 = vadd.f32 %v748, %v842
      %v844 = vpop.f32.mrb[0].mxu0
      %v845 = vadd.f32 %v750, %v844
      %846 = vdwg.mxu0
      %847 = vxpose.xlu0.b32.start [1/16] %v822, 128
      %848 = vxpose.xlu0.b32.cont [2/16] %v829, 128
      %849 = vxpose.xlu0.b32.cont [3/16] %v836, 128
      %850 = vxpose.xlu0.b32.cont [4/16] %v843, 128
      %851 = vxpose.xlu0.b32.cont [5/16] 0.0, 128
      %852 = vxpose.xlu0.b32.cont [6/16] 0.0, 128
      %853 = vxpose.xlu0.b32.cont [7/16] 0.0, 128
      %854 = vxpose.xlu0.b32.cont [8/16] 0.0, 128
      %855 = vxpose.xlu0.b32.cont [9/16] 0.0, 128
      %856 = vxpose.xlu0.b32.cont [10/16] 0.0, 128
      %857 = vxpose.xlu0.b32.cont [11/16] 0.0, 128
      %858 = vxpose.xlu0.b32.cont [12/16] 0.0, 128
      %859 = vxpose.xlu0.b32.cont [13/16] 0.0, 128
      %860 = vxpose.xlu0.b32.cont [14/16] 0.0, 128
      %861 = vxpose.xlu0.b32.cont [15/16] 0.0, 128
      %862 = vxpose.xlu0.b32.end [16/16] 0.0, 128
      %v863 = vpop.trf.xlu0
      %v864 = vpop.trf.xlu0
      %v865 = vpop.trf.xlu0
      %v866 = vpop.trf.xlu0
      %v867 = vpop.trf.xlu0
      %v868 = vpop.trf.xlu0
      %v869 = vpop.trf.xlu0
      %v870 = vpop.trf.xlu0
      %v871 = vpop.trf.xlu0
      %v872 = vpop.trf.xlu0
      %v873 = vpop.trf.xlu0
      %v874 = vpop.trf.xlu0
      %v875 = vpop.trf.xlu0
      %v876 = vpop.trf.xlu0
      %v877 = vpop.trf.xlu0
      %v878 = vpop.trf.xlu0
      %879 = vxpose.xlu0.b32.start [1/16] %v824, 128
      %880 = vxpose.xlu0.b32.cont [2/16] %v831, 128
      %881 = vxpose.xlu0.b32.cont [3/16] %v838, 128
      %882 = vxpose.xlu0.b32.cont [4/16] %v845, 128
      %883 = vxpose.xlu0.b32.cont [5/16] 0.0, 128
      %884 = vxpose.xlu0.b32.cont [6/16] 0.0, 128
      %885 = vxpose.xlu0.b32.cont [7/16] 0.0, 128
      %886 = vxpose.xlu0.b32.cont [8/16] 0.0, 128
      %887 = vxpose.xlu0.b32.cont [9/16] 0.0, 128
      %888 = vxpose.xlu0.b32.cont [10/16] 0.0, 128
      %889 = vxpose.xlu0.b32.cont [11/16] 0.0, 128
      %890 = vxpose.xlu0.b32.cont [12/16] 0.0, 128
      %891 = vxpose.xlu0.b32.cont [13/16] 0.0, 128
      %892 = vxpose.xlu0.b32.cont [14/16] 0.0, 128
      %893 = vxpose.xlu0.b32.cont [15/16] 0.0, 128
      %894 = vxpose.xlu0.b32.end [16/16] 0.0, 128
      %v895 = vpop.trf.xlu0
      %v896 = vpop.trf.xlu0
      %v897 = vpop.trf.xlu0
      %v898 = vpop.trf.xlu0
      %v899 = vpop.trf.xlu0
      %v900 = vpop.trf.xlu0
      %v901 = vpop.trf.xlu0
      %v902 = vpop.trf.xlu0
      %v903 = vpop.trf.xlu0
      %v904 = vpop.trf.xlu0
      %v905 = vpop.trf.xlu0
      %v906 = vpop.trf.xlu0
      %v907 = vpop.trf.xlu0
      %v908 = vpop.trf.xlu0
      %v909 = vpop.trf.xlu0
      %v910 = vpop.trf.xlu0
      %v911 = vld [vmem:[%s2] sm:$0x1]
      %v913 = vlaneseq
      %v914 = vshrl.u32 %v913, 7
      %v915 = vsub.s32 0, %v914
      %v916 = vrot.slane %v911, %v915
      %v918 = vadd.f32 %v863, %v916
      %v919 = vadd.f32 %v864, %v916
      %v920 = vadd.f32 %v865, %v916
      %v921 = vadd.f32 %v866, %v916
      %v922 = vadd.f32 %v867, %v916
      %v923 = vadd.f32 %v868, %v916
      %v924 = vadd.f32 %v869, %v916
      %v925 = vadd.f32 %v870, %v916
      %v926 = vadd.f32 %v871, %v916
      %v927 = vadd.f32 %v872, %v916
      %v928 = vadd.f32 %v873, %v916
      %v929 = vadd.f32 %v874, %v916
      %v930 = vadd.f32 %v875, %v916
      %v931 = vadd.f32 %v876, %v916
      %v932 = vadd.f32 %v877, %v916
      %v933 = vadd.f32 %v878, %v916
      %v934 = vadd.f32 %v895, %v916
      %v935 = vadd.f32 %v896, %v916
      %v936 = vadd.f32 %v897, %v916
      %v937 = vadd.f32 %v898, %v916
      %v938 = vadd.f32 %v899, %v916
      %v939 = vadd.f32 %v900, %v916
      %v940 = vadd.f32 %v901, %v916
      %v941 = vadd.f32 %v902, %v916
      %v942 = vadd.f32 %v903, %v916
      %v943 = vadd.f32 %v904, %v916
      %v944 = vadd.f32 %v905, %v916
      %v945 = vadd.f32 %v906, %v916
      %v946 = vadd.f32 %v907, %v916
      %v947 = vadd.f32 %v908, %v916
      %v948 = vadd.f32 %v909, %v916
      %v949 = vadd.f32 %v910, %v916
      %vm950 = vcmask 261120
      %951 = vst.msk [vmem:[%s208] sm:$0xff] %vm950, %v918
      %952 = vst.msk [vmem:[%s208 + $0x8] sm:$0xff] %vm950, %v919
      %953 = vst.msk [vmem:[%s208 + $0x10] sm:$0xff] %vm950, %v920
      %954 = vst.msk [vmem:[%s208 + $0x18] sm:$0xff] %vm950, %v921
      %955 = vst.msk [vmem:[%s208 + $0x20] sm:$0xff] %vm950, %v922
      %956 = vst.msk [vmem:[%s208 + $0x28] sm:$0xff] %vm950, %v923
      %957 = vst.msk [vmem:[%s208 + $0x30] sm:$0xff] %vm950, %v924
      %958 = vst.msk [vmem:[%s208 + $0x38] sm:$0xff] %vm950, %v925
      %959 = vst.msk [vmem:[%s208 + $0x40] sm:$0xff] %vm950, %v926
      %960 = vst.msk [vmem:[%s208 + $0x48] sm:$0xff] %vm950, %v927
      %961 = vst.msk [vmem:[%s208 + $0x50] sm:$0xff] %vm950, %v928
      %962 = vst.msk [vmem:[%s208 + $0x58] sm:$0xff] %vm950, %v929
      %963 = vst.msk [vmem:[%s208 + $0x60] sm:$0xff] %vm950, %v930
      %964 = vst.msk [vmem:[%s208 + $0x68] sm:$0xff] %vm950, %v931
      %965 = vst.msk [vmem:[%s208 + $0x70] sm:$0xff] %vm950, %v932
      %966 = vst.msk [vmem:[%s208 + $0x78] sm:$0xff] %vm950, %v933
      %967 = vst.msk [vmem:[%s208 + $0x80] sm:$0xff] %vm950, %v934
      %968 = vst.msk [vmem:[%s208 + $0x88] sm:$0xff] %vm950, %v935
      %969 = vst.msk [vmem:[%s208 + $0x90] sm:$0xff] %vm950, %v936
      %970 = vst.msk [vmem:[%s208 + $0x98] sm:$0xff] %vm950, %v937
      %971 = vst.msk [vmem:[%s208 + $0xa0] sm:$0xff] %vm950, %v938
      %972 = vst.msk [vmem:[%s208 + $0xa8] sm:$0xff] %vm950, %v939
      %973 = vst.msk [vmem:[%s208 + $0xb0] sm:$0xff] %vm950, %v940
      %974 = vst.msk [vmem:[%s208 + $0xb8] sm:$0xff] %vm950, %v941
      %975 = vst.msk [vmem:[%s208 + $0xc0] sm:$0xff] %vm950, %v942
      %976 = vst.msk [vmem:[%s208 + $0xc8] sm:$0xff] %vm950, %v943
      %977 = vst.msk [vmem:[%s208 + $0xd0] sm:$0xff] %vm950, %v944
      %978 = vst.msk [vmem:[%s208 + $0xd8] sm:$0xff] %vm950, %v945
      %979 = vst.msk [vmem:[%s208 + $0xe0] sm:$0xff] %vm950, %v946
      %980 = vst.msk [vmem:[%s208 + $0xe8] sm:$0xff] %vm950, %v947
      %981 = vst.msk [vmem:[%s208 + $0xf0] sm:$0xff] %vm950, %v948
      %982 = vst.msk [vmem:[%s208 + $0xf8] sm:$0xff] %vm950, %v949
      %s983 = smul.u32 32, %s19
      %p984 = scmp.lt.s32.totalorder %s18, 1
      %s985 = scalar_select %p984, %s18, 1
      %p986 = scmp.lt.s32.totalorder %s983, 31
      %s987 = scalar_select %p986, %s983, 31
      %s988 = smul.addr %s985, 32
      %s989 = sadd.s32 %s987, %s988
      %s990 = smul.addr %s989, 8
      %s991 = scalar_lea.vmem %s3, %s990
      // Predicated region
      $region33: #{simple_module_forward.1} parent=31 // pred_check
        %p992 = pneg %p116
      $region34: #{simple_module_forward.1} parent=31 // pred_check_branch
        %994 = sbr.rel (%p992) target = $region36
      $region35: #{simple_module_forward.1} parent=31 // pred_region
        %s995 = smul.u32 32, %s19
      $region36: #{simple_module_forward.1} parent=31 // pred_fallthru
        _
    $region32: #{simple_module_forward.1} parent=5 // pred_fallthru
      _
    %p996 = scmp.le.s32.totalorder 2, %s9
    // Predicated region
    $region37: #{simple_module_forward.1} parent=5 // pred_check
      %p997 = pneg %p996
    $region38: #{simple_module_forward.1} parent=5 // pred_check_branch
      %999 = sbr.rel (%p997) target = $region40
    $region39: #{simple_module_forward.1} parent=5 // pred_region
      %s1000 = ssub.s32 %s9, 2
      // Predicated region
      $region41: #{simple_module_forward.1} parent=39 // pred_check
        %p1001 = pneg %p122
      $region42: #{simple_module_forward.1} parent=39 // pred_check_branch
        %1003 = sbr.rel (%p1001) target = $region44
      $region43: #{simple_module_forward.1} parent=39 // pred_region
        %s1004 = smul.u32 32, %s21
        %p1005 = scmp.lt.s32.totalorder %s20, 1
        %s1006 = scalar_select %p1005, %s20, 1
        %p1007 = scmp.lt.s32.totalorder %s1004, 31
        %s1008 = scalar_select %p1007, %s1004, 31
        %s1009 = smul.addr %s1006, 32
        %s1010 = sadd.s32 %s1008, %s1009
        %s1011 = smul.addr %s1010, 8
        %s1012 = scalar_lea.vmem %s3, %s1011
      $region44: #{simple_module_forward.1} parent=39 // pred_fallthru
        _
    $region40: #{simple_module_forward.1} parent=5 // pred_fallthru
      _
  $region6: #{simple_module_forward.1} parent=0 // loop_footer
    %s13 = sadd.s32 1, %s9
  $region7: #{simple_module_forward.1} parent=0 // loop_footer_branch
    %8 = sbr.rel target = $region3
  $region8: #{simple_module_forward.1} parent=0 // loop_exit
    _

</llo_original>
